<compile_context>
chip_gen: v6e
topology: v6e:2x2x1
jax: 0.10.0
libtpu: 0.0.40
codegen_flags: <defaults>
</compile_context>

<pallas_src>
import functools
import math

import jax
import jax.numpy as jnp
from jax.experimental import pallas as pl
from jax.experimental.pallas import tpu as pltpu


def _round_up(v, m):
    return ((v + m - 1) // m) * m


def _default_num_cores():
    """TensorCores per device: 2 on v4/v5p (megacore) and v7x, else 1."""
    try:
        kind = jax.devices()[0].device_kind.lower()
    except Exception:
        return 1
    if ("v7" in kind) or ("v4" in kind) or ("v5p" in kind):
        return 2
    return 1


def _mixture_kernel(xt_ref, w_ref, bias_ref, out_ref, feat_ref, *, d_pad,
                    approx_recip):
    step = pl.program_id(1)

    @pl.when(step == 0)
    def _():
        out_ref[...] = jnp.zeros_like(out_ref)

    xt = xt_ref[...]                                   # (D_pad, TN), stream dtype
    # Feature slab [x*x ; x] written straight into persistent VMEM scratch
    # (no concatenate temp); bf16 when use_bf16 so the MXU gets native operands.
    feat_ref[:d_pad, :] = (xt * xt).astype(feat_ref.dtype)
    feat_ref[d_pad:, :] = xt.astype(feat_ref.dtype)

    # logp = -0.5*(x-mu)^2*iv + const + logpi  ==  W @ [x*x ; x] + bias
    logp = jax.lax.dot_general(
        w_ref[...], feat_ref[...], (((1,), (0,)), ((), ())),
        preferred_element_type=jnp.float32) + bias_ref[...]   # (C_pad, TN) f32

    # Softmax over centers (sublane axis); per-point reciprocal on the EUP slot.
    m = jnp.max(logp, axis=0, keepdims=True)           # (1, TN)
    e = jnp.exp(logp - m)                              # (C_pad, TN)
    inv = pl.reciprocal(jnp.sum(e, axis=0, keepdims=True), approx=approx_recip)

    # Accumulate per-center responsibility sums directly in the resident
    # output block (one block per core).
    out_ref[0] += jnp.sum(e * inv, axis=1, keepdims=True)      # (C_pad, 1)


@functools.partial(jax.jit, static_argnames=("states", "degree", "tile_n",
                                             "num_cores", "use_bf16"))
def density_classifier_forward(x, mu, logvar, logpi, a, cb, *, states=2,
                               degree=2, tile_n=None, num_cores=None,
                               use_bf16=True):
    N, D = x.shape
    C = mu.shape[0]
    s1 = states - 1

    if num_cores is None:
        num_cores = _default_num_cores()

    stream_dtype = jnp.bfloat16 if use_bf16 else jnp.float32
    mxu_dtype = jnp.bfloat16 if use_bf16 else jnp.float32

    # Pad D to a packing-friendly multiple of 16 (bf16 sublane tile) and C to a
    # multiple of 8; padded centers get bias = -1e30 -> zero responsibility.
    d_pad = _round_up(D, 16)
    c_pad = _round_up(C, 8)

    # ---- hoisted, loop-invariant mixture algebra (done once) ----------------
    iv = jnp.exp(-logvar)                                        # (C, D)
    w = jnp.zeros((c_pad, 2 * d_pad), jnp.float32)
    w = w.at[:C, :D].set(-0.5 * iv)                              # quadratic part
    w = w.at[:C, d_pad:d_pad + D].set(mu * iv)                   # linear part
    const = jnp.sum(mu * mu * iv + logvar, axis=1)               # (C,)
    bias_real = logpi[0] - 0.5 * (const + D * math.log(2.0 * math.pi))
    bias = jnp.full((c_pad, 1), -1e30, jnp.float32)
    bias = bias.at[:C, 0].set(bias_real.astype(jnp.float32))
    w = w.astype(mxu_dtype)

    # ---- tile sizing by bytes of per-step working set (v7x-safe budget) -----
    stream_isz = jnp.dtype(stream_dtype).itemsize
    feat_isz = jnp.dtype(mxu_dtype).itemsize
    bytes_per_col = (2 * d_pad * stream_isz        # double-buffered x tile
                     + 2 * d_pad * feat_isz        # persistent feat scratch
                     + 4 * c_pad * 4)              # logp/e/r f32 temps + slack
    vmem_budget = 20 << 20                          # per-TC working-set target
    cap_by_vmem = max(128, (vmem_budget // bytes_per_col) // 128 * 128)
    cap_by_n = _round_up(int(pl.cdiv(N, num_cores)), 128)
    if tile_n is None:
        tile_n = cap_by_vmem
    tile_n = min(_round_up(max(tile_n, 128), 128), cap_by_vmem, cap_by_n)
    steps = max(1, int(pl.cdiv(N, num_cores * tile_n)))
    n_pad = num_cores * steps * tile_n
    vmem_limit = int(min(64 << 20,
                         max(16 << 20,
                             bytes_per_col * tile_n * 7 // 4 + (4 << 20))))

    # Lane-dense (D, N) stream (points on the 128-wide lane axis); padded
    # columns are exactly zero and corrected analytically after the kernel.
    xt = x.T.astype(stream_dtype)
    xt = jnp.pad(xt, ((0, d_pad - D), (0, n_pad - N)))           # (D_pad, n_pad)

    kernel = functools.partial(_mixture_kernel, d_pad=d_pad,
                               approx_recip=use_bf16)

    partial_sums = pl.pallas_call(
        kernel,
        out_shape=jax.ShapeDtypeStruct((num_cores, c_pad, 1), jnp.float32),
        grid_spec=pltpu.PrefetchScalarGridSpec(
            num_scalar_prefetch=0,
            grid=(num_cores, steps),
            in_specs=[
                pl.BlockSpec((d_pad, tile_n), lambda g, s: (0, g * steps + s)),
                pl.BlockSpec((c_pad, 2 * d_pad), lambda g, s: (0, 0)),
                pl.BlockSpec((c_pad, 1), lambda g, s: (0, 0)),
            ],
            out_specs=pl.BlockSpec((1, c_pad, 1), lambda g, s: (g, 0, 0)),
            scratch_shapes=[pltpu.VMEM((2 * d_pad, tile_n), mxu_dtype)],
        ),
        compiler_params=pltpu.CompilerParams(
            dimension_semantics=("parallel", "arbitrary"),
            vmem_limit_bytes=vmem_limit),
    )(xt, w, bias)

    # Padded columns (x = 0) each contribute exactly softmax(bias); subtract
    # their total instead of masking every tile in-kernel.
    total = jnp.sum(partial_sums, axis=(0, 2))                   # (C_pad,)
    pad_resp = jax.nn.softmax(bias[:, 0])                        # (C_pad,)
    d_vec = ((total - (n_pad - N) * pad_resp) / N)[:C]           # (C,)

    # self.d = mixture(x).unsqueeze_(0); PolynomialLayer epilogue (tiny),
    # vectorized in plain JAX (avoids a lane-sparse scalar tail in the kernel).
    powers = d_vec[None, :] ** jnp.arange(1, degree + 1,
                                          dtype=jnp.float32)[:, None]  # (deg, C)
    vals = jnp.einsum('sdc,dc->s', a.reshape(s1, degree, C), powers) + cb[0]
    return jnp.concatenate(
        [jnp.zeros((1, 1), jnp.float32), vals[None, :]], axis=1)   # (1, states)


def reference_forward(x, mu, logvar, logpi, a, cb, states, degree):
    """Plain-JAX reference mirroring the PyTorch forward semantics."""
    iv = jnp.exp(-logvar)
    diff = x[:, None, :] - mu[None, :, :]
    logp = (-0.5 * jnp.sum(diff * diff * iv[None] + logvar[None], axis=-1)
            - 0.5 * x.shape[1] * math.log(2.0 * math.pi) + logpi[0][None, :])
    r = jax.nn.softmax(logp, axis=1)
    d = jnp.mean(r, axis=0, keepdims=True)                       # (1, C)
    cols = [jnp.zeros((1, 1), jnp.float32)]
    for s in range(states - 1):
        v = cb[0, s]
        for i in range(degree):
            v = v + jnp.sum(a[s * degree + i] * d[0] ** (i + 1))
        cols.append(jnp.reshape(v, (1, 1)))
    return jnp.concatenate(cols, axis=1)


if __name__ == "__main__":
    # TODO(synk): `mixture` is constructor-injected in the PyTorch code; the
    # diagonal-Gaussian soft-responsibility mixture implemented here is the
    # representative cloudpred choice.
    N, D, C = 200, 16, 8          # ragged N exercises the padded-tail correction
    STATES, DEGREE = 3, 2

    key = jax.random.PRNGKey(0)
    kx, kmu, klv, kpi, ka, kc = jax.random.split(key, 6)
    x = jax.random.normal(kx, (N, D), jnp.float32)
    mu = jax.random.normal(kmu, (C, D), jnp.float32)
    logvar = 0.1 * jax.random.normal(klv, (C, D), jnp.float32)
    logpi = jax.nn.log_softmax(
        jax.random.normal(kpi, (1, C), jnp.float32), axis=1)
    a = 0.1 * jax.random.normal(ka, ((STATES - 1) * DEGREE, C), jnp.float32)
    cb = 0.1 * jax.random.normal(kc, (1, STATES - 1), jnp.float32)

    ref = reference_forward(x, mu, logvar, logpi, a, cb, STATES, DEGREE)

    # Precise path (f32 stream, f32 MXU, exact reciprocal): tight tolerance.
    out_f32 = density_classifier_forward(x, mu, logvar, logpi, a, cb,
                                         states=STATES, degree=DEGREE,
                                         use_bf16=False)
    out_f32 = jax.block_until_ready(out_f32)
    assert out_f32.shape == (1, STATES), out_f32.shape
    if not jnp.allclose(out_f32, ref, atol=1e-4, rtol=1e-4):
        raise AssertionError(f"f32 mismatch: pallas={out_f32} ref={ref}")

    # Default fast path (bf16 stream + bf16 MXU + EUP approx reciprocal):
    # bf16-appropriate tolerance.
    out_bf16 = density_classifier_forward(x, mu, logvar, logpi, a, cb,
                                          states=STATES, degree=DEGREE)
    out_bf16 = jax.block_until_ready(out_bf16)
    assert out_bf16.shape == (1, STATES), out_bf16.shape
    if not jnp.allclose(out_bf16, ref, atol=2e-2, rtol=2e-2):
        raise AssertionError(f"bf16 mismatch: pallas={out_bf16} ref={ref}")

    print("KERNEL_OK")
</pallas_src>

<mosaic_0001>
module attributes {stable_mosaic.version = 11 : i64} {
  func.func @_mixture_kernel(%arg0: i32, %arg1: i32, %arg2: memref<16x256xf32, #tpu.memory_space<vmem>>, %arg3: memref<8x32xf32, #tpu.memory_space<vmem>>, %arg4: memref<8x1xf32, #tpu.memory_space<vmem>>, %arg5: memref<1x8x1xf32, #tpu.memory_space<vmem>>, %arg6: memref<32x256xf32, #tpu.memory_space<vmem>>) attributes {dimension_semantics = [#tpu.dimension_semantics<parallel>, #tpu.dimension_semantics<arbitrary>], iteration_bounds = array<i64: 1, 1>, scalar_prefetch = 0 : i64, scratch_operands = 1 : i64, tpu.core_type = #tpu.core_type<tc>, window_params = [{transform_indices = @transform_0, window_bounds = array<i64: 16, 256>}, {pipeline_mode = #tpu.pipeline_mode<synchronous>, transform_indices = @transform_1, window_bounds = array<i64: 8, 32>}, {pipeline_mode = #tpu.pipeline_mode<synchronous>, transform_indices = @transform_2, window_bounds = array<i64: 8, 1>}, {transform_indices = @transform_3, window_bounds = array<i64: 1, 8, 1>}]} {
    %c0_i32 = arith.constant 0 : i32
    %0 = arith.cmpi eq, %arg1, %c0_i32 : i32
    %1 = arith.extui %0 : i1 to i32
    %c0_i32_0 = arith.constant 0 : i32
    %2 = arith.cmpi ne, %1, %c0_i32_0 : i32
    scf.if %2 {
      %cst_20 = arith.constant 0.000000e+00 : f32
      %31 = vector.broadcast %cst_20 : f32 to vector<1x8x1xf32>
      %c0_21 = arith.constant 0 : index
      %c0_22 = arith.constant 0 : index
      %c0_23 = arith.constant 0 : index
      %32 = vector.load %arg5[%c0_21, %c0_22, %c0_23] : memref<1x8x1xf32, #tpu.memory_space<vmem>>, vector<1x8x1xf32>
      tpu.vector_store %arg5[%c0_21, %c0_22, %c0_23], %31 {strides = array<i32>} : memref<1x8x1xf32, #tpu.memory_space<vmem>>, vector<1x8x1xf32>,
    } else {
    }
    %c0 = arith.constant 0 : index
    %c0_1 = arith.constant 0 : index
    %3 = vector.load %arg2[%c0, %c0_1] : memref<16x256xf32, #tpu.memory_space<vmem>>, vector<16x256xf32>
    %4 = arith.mulf %3, %3 : vector<16x256xf32>
    %c0_2 = arith.constant 0 : index
    %c0_3 = arith.constant 0 : index
    %5 = vector.load %arg6[%c0_2, %c0_3] : memref<32x256xf32, #tpu.memory_space<vmem>>, vector<16x256xf32>
    tpu.vector_store %arg6[%c0_2, %c0_3], %4 {strides = array<i32>} : memref<32x256xf32, #tpu.memory_space<vmem>>, vector<16x256xf32>,
    %c16 = arith.constant 16 : index
    %c0_4 = arith.constant 0 : index
    %6 = vector.load %arg6[%c16, %c0_4] : memref<32x256xf32, #tpu.memory_space<vmem>>, vector<16x256xf32>
    tpu.vector_store %arg6[%c16, %c0_4], %3 {strides = array<i32>} : memref<32x256xf32, #tpu.memory_space<vmem>>, vector<16x256xf32>,
    %c0_5 = arith.constant 0 : index
    %c0_6 = arith.constant 0 : index
    %7 = vector.load %arg3[%c0_5, %c0_6] : memref<8x32xf32, #tpu.memory_space<vmem>>, vector<8x32xf32>
    %c0_7 = arith.constant 0 : index
    %c0_8 = arith.constant 0 : index
    %8 = vector.load %arg6[%c0_7, %c0_8] : memref<32x256xf32, #tpu.memory_space<vmem>>, vector<32x256xf32>
    %cst = arith.constant dense<0.000000e+00> : vector<8x256xf32>
    %9 = tpu.matmul %7, %8, %cst {dimension_numbers = #tpu.dot_dimension_numbers<[1], [0], [0], [1], [0, 0, 1, 1], [], []>} : vector<8x32xf32>, vector<32x256xf32>, vector<8x256xf32> -> vector<8x256xf32>
    %c0_9 = arith.constant 0 : index
    %c0_10 = arith.constant 0 : index
    %10 = vector.load %arg4[%c0_9, %c0_10] : memref<8x1xf32, #tpu.memory_space<vmem>>, vector<8x1xf32>
    %11 = vector.broadcast %10 : vector<8x1xf32> to vector<8x256xf32>
    %12 = arith.addf %9, %11 : vector<8x256xf32>
    %cst_11 = arith.constant dense<0xFF800000> : vector<256xf32>
    %13 = vector.multi_reduction <maximumf>, %12, %cst_11 [0] : vector<8x256xf32> to vector<256xf32>
    %14 = vector.shape_cast %13 : vector<256xf32> to vector<1x256xf32>
    %15 = vector.broadcast %14 : vector<1x256xf32> to vector<8x256xf32>
    %16 = arith.subf %12, %15 : vector<8x256xf32>
    %17 = math.exp %16 : vector<8x256xf32>
    %cst_12 = arith.constant dense<0.000000e+00> : vector<256xf32>
    %18 = vector.multi_reduction <add>, %17, %cst_12 [0] : vector<8x256xf32> to vector<256xf32>
    %19 = vector.shape_cast %18 : vector<256xf32> to vector<1x256xf32>
    %20 = tpu.reciprocal %19 : vector<1x256xf32> -> vector<1x256xf32>
    %c0_13 = arith.constant 0 : index
    %c0_14 = arith.constant 0 : index
    %c0_15 = arith.constant 0 : index
    %21 = vector.load %arg5[%c0_13, %c0_14, %c0_15] : memref<1x8x1xf32, #tpu.memory_space<vmem>>, vector<1x8x1xf32>
    %22 = vector.shape_cast %21 : vector<1x8x1xf32> to vector<8x1xf32>
    %23 = vector.broadcast %20 : vector<1x256xf32> to vector<8x256xf32>
    %24 = arith.mulf %17, %23 : vector<8x256xf32>
    %cst_16 = arith.constant dense<0.000000e+00> : vector<8xf32>
    %25 = vector.multi_reduction <add>, %24, %cst_16 [1] : vector<8x256xf32> to vector<8xf32>
    %26 = vector.shape_cast %25 : vector<8xf32> to vector<8x1xf32>
    %27 = arith.addf %22, %26 : vector<8x1xf32>
    %c0_17 = arith.constant 0 : index
    %c0_18 = arith.constant 0 : index
    %c0_19 = arith.constant 0 : index
    %28 = vector.load %arg5[%c0_17, %c0_18, %c0_19] : memref<1x8x1xf32, #tpu.memory_space<vmem>>, vector<1x8x1xf32>
    %29 = vector.shape_cast %28 : vector<1x8x1xf32> to vector<8x1xf32>
    %30 = vector.shape_cast %27 : vector<8x1xf32> to vector<1x8x1xf32>
    tpu.vector_store %arg5[%c0_17, %c0_18, %c0_19], %30 {strides = array<i32>} : memref<1x8x1xf32, #tpu.memory_space<vmem>>, vector<1x8x1xf32>,
    return
  }
  func.func @transform_0(%arg0: i32, %arg1: i32) -> (i32, i32) {
    %c1_i32 = arith.constant 1 : i32
    %0 = arith.muli %arg0, %c1_i32 : i32
    %1 = arith.addi %0, %arg1 : i32
    %c0_i32 = arith.constant 0 : i32
    %c0_i32_0 = arith.constant 0 : i32
    return %c0_i32, %1 : i32, i32
  }
  func.func @transform_1(%arg0: i32, %arg1: i32) -> (i32, i32) {
    %c0_i32 = arith.constant 0 : i32
    %c0_i32_0 = arith.constant 0 : i32
    %c0_i32_1 = arith.constant 0 : i32
    return %c0_i32, %c0_i32_0 : i32, i32
  }
  func.func @transform_2(%arg0: i32, %arg1: i32) -> (i32, i32) {
    %c0_i32 = arith.constant 0 : i32
    %c0_i32_0 = arith.constant 0 : i32
    %c0_i32_1 = arith.constant 0 : i32
    return %c0_i32, %c0_i32_0 : i32, i32
  }
  func.func @transform_3(%arg0: i32, %arg1: i32) -> (i32, i32, i32) {
    %c0_i32 = arith.constant 0 : i32
    %c0_i32_0 = arith.constant 0 : i32
    %c0_i32_1 = arith.constant 0 : i32
    return %arg0, %c0_i32, %c0_i32_0 : i32, i32, i32
  }
}

</mosaic_0001>

<llo_original>
// kernel: sub.17
$region0: #{sub.17}
  #allocation0 [shape = 's32[1]{0}', space=sflag, size = 0x4, scoped, tag = 'scoped memory for sub.17']
  %s0 = inlined_call_operand.vmem [shape: f32[8,1], index: 0, kind: input, shape index: {}]
  %s1 = inlined_call_operand.vmem [shape: f32[8,1], index: 1, kind: input, shape index: {}]
  %s2 = inlined_call_operand.vmem [shape: f32[8,1], index: 2, kind: output, shape index: {}]
  %v3 = vld [vmem:[%s0] sm:$0xff]
  %v4 = vld [vmem:[%s1] sm:$0xff]
  %5 = xla_tuple %v3, %v4
  %6 = xla_tuple %5
  %v7 = vsub.f32 %v3, %v4
  %8 = xla_tuple %v7
  %9 = vst [vmem:[%s2] sm:$0xff] %v7

// kernel: density_classifier_forward.1
$region0: #{density_classifier_forward.1}
  #allocation0 [shape = 'u32[]', space=smem, size = 0x4, offset = 0x4, fixed_abs, tag = 'smem constant byte address 0x4 - core index']
  #allocation1 [shape = 'u32[144,128]{1,0:T(1,128)}', space=vmem, size = 0x12000, scoped, tag = 'internal scratch']
  #allocation2 [shape = 'f32[32,256]{1,0:T(8,128)}', space=vmem, size = 0x8000, scoped, tag = 'scratch operand']
  %s0 = inlined_call_operand.vmem [shape: f32[16,256], index: 0, kind: input, shape index: {}]
  %s1 = inlined_call_operand.vmem [shape: f32[8,32], index: 1, kind: input, shape index: {}]
  %s2 = inlined_call_operand.vmem [shape: f32[8,1], index: 2, kind: input, shape index: {}]
  %s3 = inlined_call_operand.vmem [shape: f32[1,8,1], index: 3, kind: output, shape index: {}]
  %s4 = sld [smem:[#allocation0]]
  $region26: #{density_classifier_forward.1} parent=0
    _
  %s6 = ssub.s32 1, %s4
  %s7 = scalar_select 0, %s6, %s4
  // Predicated region
  $region2: #{density_classifier_forward.1} parent=0 // pred_check
    _
  $region3: #{density_classifier_forward.1} parent=0 // pred_check_branch
    %9 = sbr.rel (0) target = $region5
  $region4: #{density_classifier_forward.1} parent=0 // pred_region
    %s10 = sadd.s32 0, 0
    %s11 = smul.u32 2, %s10
    %p12 = scmp.lt.s32.totalorder %s11, 1
    %s13 = scalar_select %p12, %s11, 1
    %s14 = smul.addr %s13, 8
    %s15 = scalar_lea.vmem %s0, %s14
    %s16 = sadd.s32 0, 0
    %s17 = smul.u32 2, %s16
  $region5: #{density_classifier_forward.1} parent=0 // pred_fallthru
    _
  // Predicated region
  $region6: #{density_classifier_forward.1} parent=0 // pred_check
    _
  $region7: #{density_classifier_forward.1} parent=0 // pred_check_branch
    %19 = sbr.rel (0) target = $region9
  $region8: #{density_classifier_forward.1} parent=0 // pred_region
    _
  $region9: #{density_classifier_forward.1} parent=0 // pred_fallthru
    _
  // Predicated region
  $region10: #{density_classifier_forward.1} parent=0 // pred_check
    _
  $region11: #{density_classifier_forward.1} parent=0 // pred_check_branch
    %21 = sbr.rel (0) target = $region13
  $region12: #{density_classifier_forward.1} parent=0 // pred_region
    _
  $region13: #{density_classifier_forward.1} parent=0 // pred_fallthru
    _
  %s22 = sadd.s32 0, 0
  %s23 = smul.u32 2, %s22
  %p24 = scmp.lt.s32.totalorder %s23, 1
  %s25 = scalar_select %p24, %s23, 1
  %s26 = smul.addr %s25, 8
  %s27 = scalar_lea.vmem %s0, %s26
  %s28 = sadd.s32 0, 0
  %s29 = smul.u32 2, %s28
  %p30 = scmp.lt.s32.totalorder %s29, 1
  %s31 = scalar_select %p30, %s29, 1
  %s32 = smul.addr %s31, 8
  %s33 = scalar_lea.vmem %s0, %s32
  %s34 = sadd.s32 0, 0
  %s35 = smul.u32 2, %s34
  %p36 = scmp.eq.s32.totalorder 0, 0
  // Predicated region
  $region14: #{density_classifier_forward.1} parent=0 // pred_check
    %p37 = pneg %p36
  $region15: #{density_classifier_forward.1} parent=0 // pred_check_branch
    %39 = sbr.rel (%p37) target = $region17
  $region16: #{density_classifier_forward.1} parent=0 // pred_region
    %vm40 = vcmask 7168
    %41 = vst.msk [vmem:[%s3] sm:$0xff] %vm40, 0.0
  $region17: #{density_classifier_forward.1} parent=0 // pred_fallthru
    _
  %v42 = vld [vmem:[%s33] sm:$0xff]
  %v43 = vld [vmem:[%s33 + $0x8] sm:$0xff]
  %v44 = vld [vmem:[%s33 + $0x10] sm:$0xff]
  %v45 = vld [vmem:[%s33 + $0x18] sm:$0xff]
  %v46 = vmul.f32 %v42, %v42
  %v47 = vmul.f32 %v43, %v43
  %v48 = vmul.f32 %v44, %v44
  %v49 = vmul.f32 %v45, %v45
  %50 = vst [vmem:[#allocation2] sm:$0xff] %v46
  %51 = vst [vmem:[#allocation2 + $0x8] sm:$0xff] %v47
  %52 = vst [vmem:[#allocation2 + $0x10] sm:$0xff] %v48
  %53 = vst [vmem:[#allocation2 + $0x18] sm:$0xff] %v49
  %54 = vst [vmem:[#allocation2 + $0x20] sm:$0xff] %v42
  %55 = vst [vmem:[#allocation2 + $0x28] sm:$0xff] %v43
  %56 = vst [vmem:[#allocation2 + $0x30] sm:$0xff] %v44
  %57 = vst [vmem:[#allocation2 + $0x38] sm:$0xff] %v45
  %v58 = vld [vmem:[%s1] sm:$0xff]
  %v59 = vld [vmem:[#allocation2] sm:$0xff]
  %v60 = vld [vmem:[#allocation2 + $0x8] sm:$0xff]
  %v61 = vld [vmem:[#allocation2 + $0x10] sm:$0xff]
  %v62 = vld [vmem:[#allocation2 + $0x18] sm:$0xff]
  %v63 = vld [vmem:[#allocation2 + $0x20] sm:$0xff]
  %v64 = vld [vmem:[#allocation2 + $0x28] sm:$0xff]
  %v65 = vld [vmem:[#allocation2 + $0x30] sm:$0xff]
  %v66 = vld [vmem:[#allocation2 + $0x38] sm:$0xff]
  %v67 = vld [vmem:[%s2] sm:$0xff]
  %69 = vset.pattern.permute.xlu0 0
  %70 = vperm.xlu0 %69, %v67
  %v71 = vpop.permute.xlu0 %70
  %vm73 = vcmask 261120
  %v75 = vsel %vm73, %v58, 0
  %77 = vmatprep.subr.mxu0 0.0
  %78 = vmatpush1.msra.mxu0 0.0
  %79 = vmatprep.subr.mxu0 0.0
  %80 = vmatpush1.msra.mxu0 0.0
  %81 = vmatprep.subr.mxu0 0.0
  %82 = vmatpush1.msra.mxu0 0.0
  %83 = vmatprep.subr.mxu0 0.0
  %84 = vmatpush1.msra.mxu0 0.0
  %85 = vmatprep.subr.mxu0 0.0
  %86 = vmatpush1.msra.mxu0 0.0
  %87 = vmatprep.subr.mxu0 0.0
  %88 = vmatpush1.msra.mxu0 0.0
  %89 = vmatprep.subr.mxu0 0.0
  %90 = vmatpush1.msra.mxu0 0.0
  %91 = vmatprep.subr.mxu0 0.0
  %92 = vmatpush1.msra.mxu0 0.0
  %93 = vmatprep.subr.mxu0 0.0
  %94 = vmatpush1.msra.mxu0 0.0
  %95 = vmatprep.subr.mxu0 0.0
  %96 = vmatpush1.msra.mxu0 0.0
  %97 = vmatprep.subr.mxu0 0.0
  %98 = vmatpush1.msra.mxu0 0.0
  %99 = vmatprep.subr.mxu0 0.0
  %100 = vmatpush1.msra.mxu0 0.0
  %101 = vmatprep.subr.mxu0 %v66
  %102 = vmatpush1.msra.mxu0 %v65
  %103 = vmatprep.subr.mxu0 %v64
  %104 = vmatpush1.msra.mxu0 %v63
  %105 = vmatprep.subr.mxu0 %v62
  %106 = vmatpush1.msra.mxu0 %v61
  %107 = vmatprep.subr.mxu0 %v60
  %108 = vmatpush1.msra.mxu0 %v59
  %109 = vmatprep.subr.mxu0 0.0
  %110 = vmatpush2.msra.mxu0 0.0
  %111 = vmatprep.subr.mxu0 0.0
  %112 = vmatpush2.msra.mxu0 0.0
  %113 = vmatprep.subr.mxu0 0.0
  %114 = vmatpush2.msra.mxu0 0.0
  %115 = vmatprep.subr.mxu0 0.0
  %116 = vmatpush2.msra.mxu0 0.0
  %117 = vmatprep.subr.mxu0 0.0
  %118 = vmatpush2.msra.mxu0 0.0
  %119 = vmatprep.subr.mxu0 0.0
  %120 = vmatpush2.msra.mxu0 0.0
  %121 = vmatprep.subr.mxu0 0.0
  %122 = vmatpush2.msra.mxu0 0.0
  %123 = vmatprep.subr.mxu0 0.0
  %124 = vmatpush2.msra.mxu0 0.0
  %125 = vmatprep.subr.mxu0 0.0
  %126 = vmatpush2.msra.mxu0 0.0
  %127 = vmatprep.subr.mxu0 0.0
  %128 = vmatpush2.msra.mxu0 0.0
  %129 = vmatprep.subr.mxu0 0.0
  %130 = vmatpush2.msra.mxu0 0.0
  %131 = vmatprep.subr.mxu0 0.0
  %132 = vmatpush2.msra.mxu0 0.0
  %133 = vmatprep.subr.mxu0 0.0
  %134 = vmatpush2.msra.mxu0 0.0
  %135 = vmatprep.subr.mxu0 0.0
  %136 = vmatpush2.msra.mxu0 0.0
  %137 = vmatprep.subr.mxu0 0.0
  %138 = vmatpush2.msra.mxu0 0.0
  %139 = vmatprep.subr.mxu0 0.0
  %140 = vmatpush2.msra.mxu0 0.0
  %141 = vmatprep.mubr.f32.mxu0 0.0
  %142 = vmatmul.mubr.f32.gmra.mxu0 %v75
  %v143 = vpop.f32.mrf.mxu0
  %v144 = vadd.f32 %v71, %v143
  %v145 = vpop.f32.mrf.mxu0
  %v146 = vadd.f32 %v71, %v145
  %147 = vdwg.mxu0
  %v148 = vrot.slane %v144, 4
  %v149 = vmax.f32 %v144, %v148
  %v150 = vrot.slane %v149, 2
  %v151 = vmax.f32 %v149, %v150
  %v152 = vrot.slane %v151, 1
  %v153 = vmax.f32 %v151, %v152
  %v154 = vrot.slane %v146, 4
  %v155 = vmax.f32 %v146, %v154
  %v156 = vrot.slane %v155, 2
  %v157 = vmax.f32 %v155, %v156
  %v158 = vrot.slane %v157, 1
  %v159 = vmax.f32 %v157, %v158
  %v160 = vsub.f32 %v144, %v153
  %v161 = vsub.f32 %v146, %v159
  %v162 = vmul.f32 %v160, 1.442695
  %v163 = vpow.pop %v162
  %v164 = vmul.f32 %v161, 1.442695
  %v165 = vpow.pop %v164
  %v166 = vrot.slane %v163, 4
  %v167 = vadd.f32 %v163, %v166
  %v168 = vrot.slane %v167, 2
  %v169 = vadd.f32 %v167, %v168
  %v170 = vrot.slane %v169, 1
  %v171 = vadd.f32 %v169, %v170
  %v172 = vrot.slane %v165, 4
  %v173 = vadd.f32 %v165, %v172
  %v174 = vrot.slane %v173, 2
  %v175 = vadd.f32 %v173, %v174
  %v176 = vrot.slane %v175, 1
  %v177 = vadd.f32 %v175, %v176
  %v178 = vrcp.pop %v171
  %v179 = vrcp.pop %v177
  %v180 = vld [vmem:[%s3] sm:$0xff]
  %v181 = vmul.f32 %v163, %v178
  %v182 = vmul.f32 %v165, %v179
  %v183 = vadd.f32 %v181, %v182
  %184 = vadd.xlane.f32.xlu0 %v183
  %v185 = vpop.xlane.xlu0 %184
  %v186 = vadd.f32 %v180, %v185
  %vm187 = vcmask 7168
  %188 = vst.msk [vmem:[%s3] sm:$0xff] %vm187, %v186
  // Predicated region
  $region18: #{density_classifier_forward.1} parent=0 // pred_check
    _
  $region19: #{density_classifier_forward.1} parent=0 // pred_check_branch
    %190 = sbr.rel (0) target = $region21
  $region20: #{density_classifier_forward.1} parent=0 // pred_region
    _
  $region21: #{density_classifier_forward.1} parent=0 // pred_fallthru
    _
  // Predicated region
  $region22: #{density_classifier_forward.1} parent=0 // pred_check
    _
  $region23: #{density_classifier_forward.1} parent=0 // pred_check_branch
    %192 = sbr.rel (0) target = $region25
  $region24: #{density_classifier_forward.1} parent=0 // pred_region
    _
  $region25: #{density_classifier_forward.1} parent=0 // pred_fallthru
    _

</llo_original>
